<compile_context>
chip_gen: v7x
topology: tpu7x:2x2x1
jax: 0.10.0
libtpu: 0.0.40
codegen_flags: <defaults>
</compile_context>

<pallas_src>
import functools

import jax
import jax.numpy as jnp
from jax.experimental import pallas as pl
from jax.experimental.pallas import tpu as pltpu


def _round_up(x, m):
    return (x + m - 1) // m * m


def _kldiv_kernel(logits_ref, targets_ref, out_ref, acc_ref, *,
                  inv_temp, scale, n_rows, tile_n):
    """One grid step processes a (tile_n, C) block of rows.

    Accumulates per-lane partial sums of p * (log_p - log_q) into acc_ref and,
    on the last reduction step of this split, writes the split's partial
    (already scaled by T^2 / N) into its output block.
    """
    s = pl.program_id(0)          # parallel batch split (v7x megacore)
    i = pl.program_id(1)          # reduction steps within this split
    steps = pl.num_programs(1)

    @pl.when(i == 0)
    def _():
        acc_ref[...] = jnp.zeros_like(acc_ref)

    lg = logits_ref[...].astype(jnp.float32)
    tg = targets_ref[...].astype(jnp.float32)
    if inv_temp != 1.0:           # static Python branch: skip scaling at T == 1
        lg = lg * inv_temp
        tg = tg * inv_temp

    # Numerically stable softmax pieces; reductions are per-row over lanes.
    lg_max = jnp.max(lg, axis=1, keepdims=True)
    tg_max = jnp.max(tg, axis=1, keepdims=True)
    lg_shift = lg - lg_max
    tg_shift = tg - tg_max
    lg_sum = jnp.sum(jnp.exp(lg_shift), axis=1, keepdims=True)   # (tile_n, 1)
    tg_exp = jnp.exp(tg_shift)                                   # (tile_n, C)
    tg_sum = jnp.sum(tg_exp, axis=1, keepdims=True)              # (tile_n, 1)

    # Per-row scalars only (exact reciprocal is cheap here).
    inv_tg_sum = pl.reciprocal(tg_sum, approx=False)             # (tile_n, 1)
    log_term = jnp.log(lg_sum) - jnp.log(tg_sum)                 # (tile_n, 1)

    # p * (log_p - log_q) fused elementwise:
    #   log_p - log_q = (tg_shift - lg_shift) + (log lg_sum - log tg_sum)
    # avoids materializing full-tile log_q / log_p / standalone p tiles.
    contrib = (tg_exp * inv_tg_sum) * ((tg_shift - lg_shift) + log_term)

    # Mask padded rows of a partial last block (only emitted when needed).
    if n_rows % tile_n != 0:
        block_idx = s * steps + i
        row_ids = block_idx * tile_n + jax.lax.broadcasted_iota(
            jnp.int32, (tile_n, 1), 0)
        contrib = jnp.where(row_ids < n_rows, contrib, 0.0)

    # Lane-wise partial accumulation: reduce rows (sublanes), keep lanes.
    acc_ref[...] += jnp.sum(contrib, axis=0, keepdims=True)

    @pl.when(i == steps - 1)
    def _():
        total = jnp.sum(acc_ref[...]) * scale          # single cross-lane reduce
        out_ref[...] = jnp.full(out_ref.shape, total, dtype=out_ref.dtype)


def kldiv_pallas(logits, targets, T=1.0, tile_n=2048):
    """KL(softmax(targets/T) || softmax(logits/T)), 'batchmean' reduction, * T^2."""
    assert logits.shape == targets.shape and logits.ndim == 2
    N, C = logits.shape

    # Tile sizing: memory-bound kernel -> biggest row tile that fits a
    # conservative VMEM budget (2 inputs x 2 pipeline buffers), safe on
    # v5e (16 MiB scoped default), v6e and v7x.
    bytes_per_row = C * (jnp.dtype(logits.dtype).itemsize +
                         jnp.dtype(targets.dtype).itemsize)
    vmem_budget = 12 * 1024 * 1024
    cap = max(8, (vmem_budget // (2 * bytes_per_row)) // 8 * 8)
    tile_n = max(8, min(int(tile_n), cap, _round_up(N, 8)))
    tile_n = _round_up(tile_n, 8)

    total_blocks = pl.cdiv(N, tile_n)
    # 2-way batch split so both v7x TensorCores work; no-op cost on 1-TC chips.
    n_splits = 2 if (total_blocks % 2 == 0 and total_blocks >= 2) else 1
    steps = total_blocks // n_splits

    kernel = functools.partial(
        _kldiv_kernel,
        inv_temp=1.0 / float(T),
        scale=float(T) * float(T) / float(N),
        n_rows=N,
        tile_n=tile_n,
    )

    in_map = lambda s, i: (s * steps + i, 0)

    out = pl.pallas_call(
        kernel,
        out_shape=jax.ShapeDtypeStruct((n_splits, 8, 128), jnp.float32),
        grid_spec=pltpu.PrefetchScalarGridSpec(
            num_scalar_prefetch=0,
            grid=(n_splits, steps),
            in_specs=[
                pl.BlockSpec((tile_n, C), in_map),
                pl.BlockSpec((tile_n, C), in_map),
            ],
            out_specs=pl.BlockSpec((1, 8, 128), lambda s, i: (s, 0, 0)),
            scratch_shapes=[pltpu.VMEM((1, C), jnp.float32)],
        ),
        compiler_params=pltpu.CompilerParams(
            dimension_semantics=("parallel", "arbitrary"),
        ),
    )(logits, targets)

    # Each split wrote its (already T^2/N-scaled) partial, broadcast over its
    # (8,128) block; sum one representative element per split.
    return jnp.sum(out[:, 0, 0])


def kldiv_ref(logits, targets, T=1.0):
    """Pure-JAX reference matching
    F.kl_div(log_softmax(l/T), softmax(t/T), reduction='batchmean') * T^2."""
    lg = logits.astype(jnp.float32) / T
    tg = targets.astype(jnp.float32) / T
    log_q = jax.nn.log_softmax(lg, axis=1)
    p = jax.nn.softmax(tg, axis=1)
    log_p = jax.nn.log_softmax(tg, axis=1)
    return jnp.sum(p * (log_p - log_q)) / logits.shape[0] * (T * T)


if __name__ == "__main__":
    key = jax.random.PRNGKey(0)
    k1, k2, k3, k4 = jax.random.split(key, 4)

    ok = True

    # Case 1: multi-block grid with the 2-way parallel split exercised.
    N, C = 64, 128
    logits = jax.random.normal(k1, (N, C), dtype=jnp.float32) * 2.0
    targets = jax.random.normal(k2, (N, C), dtype=jnp.float32) * 2.0
    for T in (1.0, 20.0):
        out = jax.block_until_ready(kldiv_pallas(logits, targets, T=T, tile_n=16))
        ref = kldiv_ref(logits, targets, T=T)
        ok &= bool(jnp.allclose(out, ref, rtol=3e-5, atol=1e-5))

    # Case 2: batch not divisible by the tile -> remainder-row masking path.
    N2, C2 = 40, 128
    logits2 = jax.random.normal(k3, (N2, C2), dtype=jnp.float32) * 2.0
    targets2 = jax.random.normal(k4, (N2, C2), dtype=jnp.float32) * 2.0
    out2 = jax.block_until_ready(kldiv_pallas(logits2, targets2, T=1.0, tile_n=16))
    ref2 = kldiv_ref(logits2, targets2, T=1.0)
    ok &= bool(jnp.allclose(out2, ref2, rtol=3e-5, atol=1e-5))

    # Case 3: default (large) tile_n gets clamped to the small batch.
    out3 = jax.block_until_ready(kldiv_pallas(logits[:16], targets[:16], T=1.0))
    ref3 = kldiv_ref(logits[:16], targets[:16], T=1.0)
    ok &= bool(jnp.allclose(out3, ref3, rtol=3e-5, atol=1e-5))

    assert ok, "Pallas KLDiv does not match the JAX reference"
    print("KERNEL_OK")
</pallas_src>

<mosaic_0001>
module attributes {stable_mosaic.version = 11 : i64} {
  func.func @_kldiv_kernel(%arg0: i32, %arg1: i32, %arg2: memref<16x128xf32, #tpu.memory_space<vmem>>, %arg3: memref<16x128xf32, #tpu.memory_space<vmem>>, %arg4: memref<1x8x128xf32, #tpu.memory_space<vmem>>, %arg5: memref<1x128xf32, #tpu.memory_space<vmem>>) attributes {dimension_semantics = [#tpu.dimension_semantics<parallel>, #tpu.dimension_semantics<arbitrary>], iteration_bounds = array<i64: 2, 2>, scalar_prefetch = 0 : i64, scratch_operands = 1 : i64, tpu.core_type = #tpu.core_type<tc>, window_params = [{transform_indices = @transform_0, window_bounds = array<i64: 16, 128>}, {transform_indices = @transform_1, window_bounds = array<i64: 16, 128>}, {transform_indices = @transform_2, window_bounds = array<i64: 1, 8, 128>}]} {
    %c0_i32 = arith.constant 0 : i32
    %0 = arith.cmpi eq, %arg1, %c0_i32 : i32
    %1 = arith.extui %0 : i1 to i32
    %c0_i32_0 = arith.constant 0 : i32
    %2 = arith.cmpi ne, %1, %c0_i32_0 : i32
    scf.if %2 {
      %cst_13 = arith.constant 0.000000e+00 : f32
      %37 = vector.broadcast %cst_13 : f32 to vector<1x128xf32>
      %c0_14 = arith.constant 0 : index
      %c0_15 = arith.constant 0 : index
      %38 = vector.load %arg5[%c0_14, %c0_15] : memref<1x128xf32, #tpu.memory_space<vmem>>, vector<1x128xf32>
      tpu.vector_store %arg5[%c0_14, %c0_15], %37 {strides = array<i32>} : memref<1x128xf32, #tpu.memory_space<vmem>>, vector<1x128xf32>,
    } else {
    }
    %c0 = arith.constant 0 : index
    %c0_1 = arith.constant 0 : index
    %3 = vector.load %arg2[%c0, %c0_1] : memref<16x128xf32, #tpu.memory_space<vmem>>, vector<16x128xf32>
    %c0_2 = arith.constant 0 : index
    %c0_3 = arith.constant 0 : index
    %4 = vector.load %arg3[%c0_2, %c0_3] : memref<16x128xf32, #tpu.memory_space<vmem>>, vector<16x128xf32>
    %cst = arith.constant dense<0xFF800000> : vector<16xf32>
    %5 = vector.multi_reduction <maximumf>, %3, %cst [1] : vector<16x128xf32> to vector<16xf32>
    %6 = vector.shape_cast %5 : vector<16xf32> to vector<16x1xf32>
    %cst_4 = arith.constant dense<0xFF800000> : vector<16xf32>
    %7 = vector.multi_reduction <maximumf>, %4, %cst_4 [1] : vector<16x128xf32> to vector<16xf32>
    %8 = vector.shape_cast %7 : vector<16xf32> to vector<16x1xf32>
    %9 = vector.broadcast %6 : vector<16x1xf32> to vector<16x128xf32>
    %10 = arith.subf %3, %9 : vector<16x128xf32>
    %11 = vector.broadcast %8 : vector<16x1xf32> to vector<16x128xf32>
    %12 = arith.subf %4, %11 : vector<16x128xf32>
    %13 = math.exp %10 : vector<16x128xf32>
    %cst_5 = arith.constant dense<0.000000e+00> : vector<16xf32>
    %14 = vector.multi_reduction <add>, %13, %cst_5 [1] : vector<16x128xf32> to vector<16xf32>
    %15 = vector.shape_cast %14 : vector<16xf32> to vector<16x1xf32>
    %16 = math.exp %12 : vector<16x128xf32>
    %cst_6 = arith.constant dense<0.000000e+00> : vector<16xf32>
    %17 = vector.multi_reduction <add>, %16, %cst_6 [1] : vector<16x128xf32> to vector<16xf32>
    %18 = vector.shape_cast %17 : vector<16xf32> to vector<16x1xf32>
    %19 = tpu.reciprocal %18 : vector<16x1xf32> -> vector<16x1xf32>
    %20 = math.log %15 : vector<16x1xf32>
    %21 = math.log %18 : vector<16x1xf32>
    %22 = arith.subf %20, %21 : vector<16x1xf32>
    %23 = vector.broadcast %19 : vector<16x1xf32> to vector<16x128xf32>
    %24 = arith.mulf %16, %23 : vector<16x128xf32>
    %25 = arith.subf %12, %10 : vector<16x128xf32>
    %26 = vector.broadcast %22 : vector<16x1xf32> to vector<16x128xf32>
    %27 = arith.addf %25, %26 : vector<16x128xf32>
    %28 = arith.mulf %24, %27 : vector<16x128xf32>
    %c0_7 = arith.constant 0 : index
    %c0_8 = arith.constant 0 : index
    %29 = vector.load %arg5[%c0_7, %c0_8] : memref<1x128xf32, #tpu.memory_space<vmem>>, vector<1x128xf32>
    %cst_9 = arith.constant dense<0.000000e+00> : vector<128xf32>
    %30 = vector.multi_reduction <add>, %28, %cst_9 [0] : vector<16x128xf32> to vector<128xf32>
    %31 = vector.shape_cast %30 : vector<128xf32> to vector<1x128xf32>
    %32 = arith.addf %29, %31 : vector<1x128xf32>
    %c0_10 = arith.constant 0 : index
    %c0_11 = arith.constant 0 : index
    %33 = vector.load %arg5[%c0_10, %c0_11] : memref<1x128xf32, #tpu.memory_space<vmem>>, vector<1x128xf32>
    tpu.vector_store %arg5[%c0_10, %c0_11], %32 {strides = array<i32>} : memref<1x128xf32, #tpu.memory_space<vmem>>, vector<1x128xf32>,
    %c1_i32 = arith.constant 1 : i32
    %34 = arith.cmpi eq, %arg1, %c1_i32 : i32
    %35 = arith.extui %34 : i1 to i32
    %c0_i32_12 = arith.constant 0 : i32
    %36 = arith.cmpi ne, %35, %c0_i32_12 : i32
    scf.if %36 {
      %c0_13 = arith.constant 0 : index
      %c0_14 = arith.constant 0 : index
      %37 = vector.load %arg5[%c0_13, %c0_14] : memref<1x128xf32, #tpu.memory_space<vmem>>, vector<1x128xf32>
      %38 = vector.shape_cast %37 : vector<1x128xf32> to vector<1x1x128xf32>
      %cst_15 = arith.constant dense<0.000000e+00> : vector<1xf32>
      %39 = vector.multi_reduction <add>, %38, %cst_15 [1, 2] : vector<1x1x128xf32> to vector<1xf32>
      %40 = vector.shape_cast %39 : vector<1xf32> to vector<1x1x1xf32>
      %41 = vector.extract %40[0, 0, 0] : f32 from vector<1x1x1xf32>
      %cst_16 = arith.constant 1.562500e-02 : f32
      %42 = arith.mulf %41, %cst_16 : f32
      %43 = vector.broadcast %42 : f32 to vector<1x8x128xf32>
      %c0_17 = arith.constant 0 : index
      %c0_18 = arith.constant 0 : index
      %c0_19 = arith.constant 0 : index
      %44 = vector.load %arg4[%c0_17, %c0_18, %c0_19] : memref<1x8x128xf32, #tpu.memory_space<vmem>>, vector<1x8x128xf32>
      tpu.vector_store %arg4[%c0_17, %c0_18, %c0_19], %43 {strides = array<i32>} : memref<1x8x128xf32, #tpu.memory_space<vmem>>, vector<1x8x128xf32>,
    } else {
    }
    return
  }
  func.func @transform_0(%arg0: i32, %arg1: i32) -> (i32, i32) {
    %c2_i32 = arith.constant 2 : i32
    %0 = arith.muli %arg0, %c2_i32 : i32
    %1 = arith.addi %0, %arg1 : i32
    %c0_i32 = arith.constant 0 : i32
    %c0_i32_0 = arith.constant 0 : i32
    return %1, %c0_i32 : i32, i32
  }
  func.func @transform_1(%arg0: i32, %arg1: i32) -> (i32, i32) {
    %c2_i32 = arith.constant 2 : i32
    %0 = arith.muli %arg0, %c2_i32 : i32
    %1 = arith.addi %0, %arg1 : i32
    %c0_i32 = arith.constant 0 : i32
    %c0_i32_0 = arith.constant 0 : i32
    return %1, %c0_i32 : i32, i32
  }
  func.func @transform_2(%arg0: i32, %arg1: i32) -> (i32, i32, i32) {
    %c0_i32 = arith.constant 0 : i32
    %c0_i32_0 = arith.constant 0 : i32
    %c0_i32_1 = arith.constant 0 : i32
    return %arg0, %c0_i32, %c0_i32_0 : i32, i32, i32
  }
}

</mosaic_0001>

<llo_original>
// kernel: tpu_custom_call.1
$region0: #{tpu_custom_call.1}
  #allocation0 [shape = 'u32[]', space=smem, size = 0x4, offset = 0x4, fixed_abs, tag = 'smem constant byte address 0x4 - core index']
  #allocation1 [shape = 'u32[144,128]{1,0:T(1,128)}', space=vmem, size = 0x12000, scoped, tag = 'internal scratch']
  #allocation2 [shape = 'f32[1,128]{1,0:T(1,128)}', space=vmem, size = 0x200, scoped, tag = 'scratch operand']
  %s0 = inlined_call_operand.hbm [shape: f32[64,128], index: 0, kind: input, shape index: {}]
  %s1 = inlined_call_operand.hbm [shape: f32[64,128], index: 1, kind: input, shape index: {}]
  %s2 = inlined_call_operand.hbm [shape: f32[2,8,128], index: 2, kind: output, shape index: {}]
  %s3 = sld [smem:[#allocation0]]
  $region57: #{tpu_custom_call.1} parent=0
    _
  %s5 = ssub.s32 1, %s3
  %s6 = scalar_select 0, %s5, %s3
  $region1: #{tpu_custom_call.1} parent=0
    #allocation3 [shape = 'u8[16384]{0}', space=vmem, size = 0x4000, scoped, tag = 'input window, operand 0']
    #allocation4 [shape = 's32[2]{0}', space=sflag, size = 0x8, scoped, tag = 'scoped memory for tpu_custom_call.1']
    #allocation5 [shape = 's32[2]{0}', space=sflag, size = 0x8, scoped, tag = 'scoped memory for tpu_custom_call.1']
    #allocation6 [shape = 'u8[16384]{0}', space=vmem, size = 0x4000, scoped, tag = 'input window, operand 1']
    #allocation7 [shape = 's32[2]{0}', space=sflag, size = 0x8, scoped, tag = 'scoped memory for tpu_custom_call.1']
    #allocation8 [shape = 'u8[8192]{0}', space=vmem, size = 0x2000, scoped, tag = 'output window, operand 0']
    %7 = vsyncpa [#allocation4], 0
    %s8 = scalar_lea.sflag [#allocation4], 1
    %9 = vsyncpa %s8, 0
    %10 = vsyncpa [#allocation7], 0
    %s11 = scalar_lea.sflag [#allocation7], 1
    %12 = vsyncpa %s11, 0
    %13 = vsyncpa [#allocation5], 0
    %s14 = scalar_lea.sflag [#allocation5], 1
    %15 = vsyncpa %s14, 0
    loop: start=0, step=1, limit=6
    $region2: #{tpu_custom_call.1} parent=1 // loop_pre_header
      _
    $region3: #{tpu_custom_call.1} parent=1 // loop_header
      %s17 = sphi 0, %s21
      %p18 = scmp.ge.s32.totalorder %s17, 6
      %s24 = sphi 0, %s36
      %s25 = sphi 0, %s32
      %s26 = sphi 0, %s24
      %s27 = sphi 0, %s25
      %s28 = sphi 0, %s26
      %s29 = sphi 0, %s27
      %s43 = sphi 0, %s45
      %s46 = sphi 0, %s43
      %s47 = sphi 0, %s46
      %s63 = sphi 0, %s47
      %s73 = sphi 0, %s75
      %s76 = sphi 0, %s73
      %s77 = sphi 0, %s76
      %s93 = sphi 0, %s77
      %s99 = sphi 0, %s101
      %s102 = sphi 0, %s99
      %s103 = sphi 0, %s102
      %s119 = sphi 0, %s103
    $region4: #{tpu_custom_call.1} parent=1 // loop_header_branch
      %20 = sbr.rel (%p18) target = $region8
    $region5: #{tpu_custom_call.1} parent=1 // loop_body
      %s22 = ssub.s32 %s17, 1
      %s23 = ssub.s32 %s17, 2
      %s30 = sadd.s32 1, %s25
      %p31 = scmp.ge.s32.totalorder %s30, 2
      %s32 = scalar_select %p31, 0, %s30
      %s33 = sadd.s32 1, %s24
      %s34 = scalar_select %p31, %s33, %s24
      %p35 = scmp.ge.s32.totalorder %s34, 2
      %s36 = scalar_select %p35, 0, %s34
      %s37 = smul.u32 %s24, 2
      %s38 = sadd.s32 %s37, %s25
      %s39 = smul.u32 %s36, 2
      %s40 = sadd.s32 %s39, %s32
      %s41 = ssub.s32 %s38, %s40
      %p42 = scmp.eq.s32.totalorder %s41, 0
      %s44 = sadd.s32 %s43, 1
      %s45 = scalar_select %p42, %s43, %s44
      %p48 = pneg %p42
      %p49 = scmp.eq.s32.totalorder %s17, 3
      %p50 = por %p48, %p49
      %p51 = scmp.ne.s32.totalorder %s43, %s46
      %p52 = scmp.eq.s32.totalorder %s17, 0
      %p53 = por %p51, %p52
      %p54 = scmp.ne.s32.totalorder %s43, %s46
      %p55 = scmp.eq.s32.totalorder %s22, 3
      %p56 = por %p54, %p55
      %p57 = scmp.ne.s32.totalorder %s46, %s47
      %p58 = scmp.eq.s32.totalorder %s22, 0
      %p59 = por %p57, %p58
      %p60 = scmp.ne.s32.totalorder %s46, %s47
      %p61 = scmp.eq.s32.totalorder %s23, 3
      %p62 = por %p60, %p61
      %p64 = scmp.ne.s32.totalorder %s47, %s63
      %p65 = scmp.eq.s32.totalorder %s23, 0
      %p66 = por %p64, %p65
      %s67 = smul.u32 %s24, 2
      %s68 = sadd.s32 %s67, %s25
      %s69 = smul.u32 %s36, 2
      %s70 = sadd.s32 %s69, %s32
      %s71 = ssub.s32 %s68, %s70
      %p72 = scmp.eq.s32.totalorder %s71, 0
      %s74 = sadd.s32 %s73, 1
      %s75 = scalar_select %p72, %s73, %s74
      %p78 = pneg %p72
      %p79 = scmp.eq.s32.totalorder %s17, 3
      %p80 = por %p78, %p79
      %p81 = scmp.ne.s32.totalorder %s73, %s76
      %p82 = scmp.eq.s32.totalorder %s17, 0
      %p83 = por %p81, %p82
      %p84 = scmp.ne.s32.totalorder %s73, %s76
      %p85 = scmp.eq.s32.totalorder %s22, 3
      %p86 = por %p84, %p85
      %p87 = scmp.ne.s32.totalorder %s76, %s77
      %p88 = scmp.eq.s32.totalorder %s22, 0
      %p89 = por %p87, %p88
      %p90 = scmp.ne.s32.totalorder %s76, %s77
      %p91 = scmp.eq.s32.totalorder %s23, 3
      %p92 = por %p90, %p91
      %p94 = scmp.ne.s32.totalorder %s77, %s93
      %p95 = scmp.eq.s32.totalorder %s23, 0
      %p96 = por %p94, %p95
      %s97 = ssub.s32 %s24, %s36
      %p98 = scmp.eq.s32.totalorder %s97, 0
      %s100 = sadd.s32 %s99, 1
      %s101 = scalar_select %p98, %s99, %s100
      %p104 = pneg %p98
      %p105 = scmp.eq.s32.totalorder %s17, 3
      %p106 = por %p104, %p105
      %p107 = scmp.ne.s32.totalorder %s99, %s102
      %p108 = scmp.eq.s32.totalorder %s17, 0
      %p109 = por %p107, %p108
      %p110 = scmp.ne.s32.totalorder %s99, %s102
      %p111 = scmp.eq.s32.totalorder %s22, 3
      %p112 = por %p110, %p111
      %p113 = scmp.ne.s32.totalorder %s102, %s103
      %p114 = scmp.eq.s32.totalorder %s22, 0
      %p115 = por %p113, %p114
      %p116 = scmp.ne.s32.totalorder %s102, %s103
      %p117 = scmp.eq.s32.totalorder %s23, 3
      %p118 = por %p116, %p117
      %p120 = scmp.ne.s32.totalorder %s103, %s119
      %p121 = scmp.eq.s32.totalorder %s23, 0
      %p122 = por %p120, %p121
      %p123 = scmp.le.s32.totalorder 1, %s17
      %p124 = scmp.lt.s32.totalorder %s17, 5
      %p125 = pnand %p123, %p124
      %p126 = pneg %p125
      // Predicated region
      $region9: #{tpu_custom_call.1} parent=5 // pred_check
        _
      $region10: #{tpu_custom_call.1} parent=5 // pred_check_branch
        %128 = sbr.rel (%p125) target = $region12
      $region11: #{tpu_custom_call.1} parent=5 // pred_region
        %s129 = ssub.s32 %s17, 1
      $region12: #{tpu_custom_call.1} parent=5 // pred_fallthru
        _
      %p130 = scmp.lt.s32.totalorder %s17, 4
      // Predicated region
      $region13: #{tpu_custom_call.1} parent=5 // pred_check
        %p131 = pneg %p130
      $region14: #{tpu_custom_call.1} parent=5 // pred_check_branch
        %133 = sbr.rel (%p131) target = $region16
      $region15: #{tpu_custom_call.1} parent=5 // pred_region
        // Predicated region
        $region17: #{tpu_custom_call.1} parent=15 // pred_check
          %p134 = pneg %p53
        $region18: #{tpu_custom_call.1} parent=15 // pred_check_branch
          %136 = sbr.rel (%p134) target = $region20
        $region19: #{tpu_custom_call.1} parent=15 // pred_region
          %s137 = sand.u32 %s43, 1
          %s138 = scalar_lea.sflag [#allocation4], %s137
          %s139 = sand.u32 %s43, 1
          %s140 = smul.addr %s139, 16
          %s141 = scalar_lea.vmem [#allocation3], %s140
          %s142 = smul.u32 %s24, 2
          %s143 = sadd.s32 %s142, %s25
          %s144 = smul.u32 2, %s143
          %s146 = ssub.s32 256, 256
          %147 = vsyncadd %s138, %s146
          %s148 = smul.addr %s144, 128
          %s149 = scalar_lea.hbm %s0, %s148
          %s150 = sshll.u32 %s141, 4
          %s151 = int_to_ptr.vmem [resolvable:$true] %s150
          %156 = dma.hbm_to_vmem [thread:$0]  %s149, 256, %s151, %s138, 128, 128, 8
        $region20: #{tpu_custom_call.1} parent=15 // pred_fallthru
          _
        // Predicated region
        $region21: #{tpu_custom_call.1} parent=15 // pred_check
          %p157 = pneg %p83
        $region22: #{tpu_custom_call.1} parent=15 // pred_check_branch
          %159 = sbr.rel (%p157) target = $region24
        $region23: #{tpu_custom_call.1} parent=15 // pred_region
          %s160 = sand.u32 %s73, 1
          %s161 = scalar_lea.sflag [#allocation7], %s160
          %s162 = sand.u32 %s73, 1
          %s163 = smul.addr %s162, 16
          %s164 = scalar_lea.vmem [#allocation6], %s163
          %s165 = smul.u32 %s24, 2
          %s166 = sadd.s32 %s165, %s25
          %s167 = smul.u32 2, %s166
          %s169 = ssub.s32 256, 256
          %170 = vsyncadd %s161, %s169
          %s171 = smul.addr %s167, 128
          %s172 = scalar_lea.hbm %s1, %s171
          %s173 = sshll.u32 %s164, 4
          %s174 = int_to_ptr.vmem [resolvable:$true] %s173
          %179 = dma.hbm_to_vmem [thread:$0]  %s172, 256, %s174, %s161, 128, 128, 8
        $region24: #{tpu_custom_call.1} parent=15 // pred_fallthru
          _
      $region16: #{tpu_custom_call.1} parent=5 // pred_fallthru
        _
      %p180 = scmp.le.s32.totalorder 1, %s17
      %p181 = scmp.lt.s32.totalorder %s17, 5
      %p182 = pnand %p180, %p181
      %p183 = pneg %p182
      // Predicated region
      $region25: #{tpu_custom_call.1} parent=5 // pred_check
        _
      $region26: #{tpu_custom_call.1} parent=5 // pred_check_branch
        %185 = sbr.rel (%p182) target = $region28
      $region27: #{tpu_custom_call.1} parent=5 // pred_region
        %s186 = ssub.s32 %s17, 1
        %s187 = sand.u32 %s46, 1
        %s188 = scalar_lea.sflag [#allocation4], %s187
        %s189 = sand.u32 %s46, 1
        %s190 = smul.addr %s189, 16
        %s191 = scalar_lea.vmem [#allocation3], %s190
        // Predicated region
        $region29: #{tpu_custom_call.1} parent=27 // pred_check
          %p192 = pneg %p59
        $region30: #{tpu_custom_call.1} parent=27 // pred_check_branch
          %194 = sbr.rel (%p192) target = $region32
        $region31: #{tpu_custom_call.1} parent=27 // pred_region
          %195 = dma.done %s188, 256
        $region32: #{tpu_custom_call.1} parent=27 // pred_fallthru
          _
        %s196 = sand.u32 %s76, 1
        %s197 = scalar_lea.sflag [#allocation7], %s196
        %s198 = sand.u32 %s76, 1
        %s199 = smul.addr %s198, 16
        %s200 = scalar_lea.vmem [#allocation6], %s199
        // Predicated region
        $region33: #{tpu_custom_call.1} parent=27 // pred_check
          %p201 = pneg %p89
        $region34: #{tpu_custom_call.1} parent=27 // pred_check_branch
          %203 = sbr.rel (%p201) target = $region36
        $region35: #{tpu_custom_call.1} parent=27 // pred_region
          %204 = dma.done %s197, 256
        $region36: #{tpu_custom_call.1} parent=27 // pred_fallthru
          _
        %s205 = sand.u32 %s46, 1
        %s206 = scalar_lea.sflag [#allocation4], %s205
        %s207 = sand.u32 %s46, 1
        %s208 = smul.addr %s207, 16
        %s209 = scalar_lea.vmem [#allocation3], %s208
        %p210 = pneg %p59
        %p211 = pneg %p56
        %s212 = sand.u32 %s76, 1
        %s213 = scalar_lea.sflag [#allocation7], %s212
        %s214 = sand.u32 %s76, 1
        %s215 = smul.addr %s214, 16
        %s216 = scalar_lea.vmem [#allocation6], %s215
        %p217 = pneg %p89
        %p218 = pneg %p86
        %p219 = pneg %p115
        %p220 = pneg %p112
        %s221 = sand.u32 %s102, 1
        %s222 = scalar_lea.sflag [#allocation5], %s221
        %s223 = sand.u32 %s102, 1
        %s224 = smul.addr %s223, 8
        %s225 = scalar_lea.vmem [#allocation8], %s224
        %s226 = smul.u32 %s26, 2
        %s227 = sadd.s32 %s226, %s27
        %s228 = smul.u32 2, %s227
        %s229 = smul.u32 %s26, 2
        %s230 = sadd.s32 %s229, %s27
        %s231 = smul.u32 2, %s230
        %p232 = scmp.eq.s32.totalorder %s27, 0
        // Predicated region
        $region37: #{tpu_custom_call.1} parent=27 // pred_check
          %p233 = pneg %p232
        $region38: #{tpu_custom_call.1} parent=27 // pred_check_branch
          %235 = sbr.rel (%p233) target = $region40
        $region39: #{tpu_custom_call.1} parent=27 // pred_region
          %236 = vst [vmem:[#allocation2] sm:$0x1] 0.0
        $region40: #{tpu_custom_call.1} parent=27 // pred_fallthru
          _
        %v237 = vld [vmem:[%s191] sm:$0xff]
        %v238 = vld [vmem:[%s191 + $0x8] sm:$0xff]
        %v239 = vld [vmem:[%s200] sm:$0xff]
        %v240 = vld [vmem:[%s200 + $0x8] sm:$0xff]
        %241 = vmax.xlane.f32.xlu0 %v237
        %v242 = vpop.xlane.xlu0 %241
        %243 = vmax.xlane.f32.xlu0 %v238
        %v244 = vpop.xlane.xlu0 %243
        %245 = vmax.xlane.f32.xlu0 %v239
        %v246 = vpop.xlane.xlu0 %245
        %247 = vmax.xlane.f32.xlu0 %v240
        %v248 = vpop.xlane.xlu0 %247
        %v249 = vsub.f32 %v237, %v242
        %v250 = vsub.f32 %v238, %v244
        %v251 = vsub.f32 %v239, %v246
        %v252 = vsub.f32 %v240, %v248
        %v253 = vmul.f32 %v249, 1.442695
        %v254 = vpow.pop %v253
        %v255 = vmul.f32 %v250, 1.442695
        %v256 = vpow.pop %v255
        %257 = vadd.xlane.f32.xlu0 %v254
        %v258 = vpop.xlane.xlu0 %257
        %259 = vadd.xlane.f32.xlu0 %v256
        %v260 = vpop.xlane.xlu0 %259
        %v261 = vmul.f32 %v251, 1.442695
        %v262 = vpow.pop %v261
        %v263 = vmul.f32 %v252, 1.442695
        %v264 = vpow.pop %v263
        %265 = vadd.xlane.f32.xlu0 %v262
        %v266 = vpop.xlane.xlu0 %265
        %267 = vadd.xlane.f32.xlu0 %v264
        %v268 = vpop.xlane.xlu0 %267
        %v269 = vrcp.pop %v266
        %v270 = vrcp.pop %v268
        %v271 = vlog2.pop %v258
        %v272 = vmul.f32 %v271, 0.6931472
        %v273 = vlog2.pop %v260
        %v274 = vmul.f32 %v273, 0.6931472
        %v275 = vlog2.pop %v266
        %v276 = vmul.f32 %v275, 0.6931472
        %v277 = vlog2.pop %v268
        %v278 = vmul.f32 %v277, 0.6931472
        %v279 = vsub.f32 %v272, %v276
        %v280 = vsub.f32 %v274, %v278
        %v281 = vmul.f32 %v262, %v269
        %v282 = vmul.f32 %v264, %v270
        %v283 = vsub.f32 %v251, %v249
        %v284 = vsub.f32 %v252, %v250
        %v285 = vadd.f32 %v283, %v279
        %v286 = vadd.f32 %v284, %v280
        %v287 = vmul.f32 %v281, %v285
        %v288 = vmul.f32 %v282, %v286
        %v289 = vld [vmem:[#allocation2] sm:$0x1]
        %v290 = vadd.f32 %v287, %v288
        %v291 = vrot.slane %v290, 4
        %v292 = vadd.f32 %v290, %v291
        %v293 = vrot.slane %v292, 2
        %v294 = vadd.f32 %v292, %v293
        %v295 = vrot.slane %v294, 1
        %v296 = vadd.f32 %v294, %v295
        %v297 = vadd.f32 %v289, %v296
        %298 = vst [vmem:[#allocation2] sm:$0x1] %v297
        %p299 = scmp.eq.s32.totalorder %s27, 1
        // Predicated region
        $region41: #{tpu_custom_call.1} parent=27 // pred_check
          %p300 = pneg %p299
        $region42: #{tpu_custom_call.1} parent=27 // pred_check_branch
          %302 = sbr.rel (%p300) target = $region44
        $region43: #{tpu_custom_call.1} parent=27 // pred_region
          %v303 = vld [vmem:[#allocation2] sm:$0x1]
          %vm304 = vcmask 1040384
          %v305 = vsel %vm304, %v303, 0.0
          %306 = vadd.xlane.f32.xlu0 %v305
          %v307 = vpop.xlane.xlu0 %306
          %v308 = vrot.slane %v307, 4
          %v309 = vadd.f32 %v307, %v308
          %v310 = vrot.slane %v309, 2
          %v311 = vadd.f32 %v309, %v310
          %v312 = vrot.slane %v311, 1
          %v313 = vadd.f32 %v311, %v312
          %s314 = vtos %v313
          %s315 = smul.f32 %s314, 0.015625
          %v316 = vstv %s315
          %317 = vst [vmem:[%s225] sm:$0xff] %v316
        $region44: #{tpu_custom_call.1} parent=27 // pred_fallthru
          _
        %s318 = sand.u32 %s102, 1
        %s319 = scalar_lea.sflag [#allocation5], %s318
        %s320 = sand.u32 %s102, 1
        %s321 = smul.addr %s320, 8
        %s322 = scalar_lea.vmem [#allocation8], %s321
        // Predicated region
        $region45: #{tpu_custom_call.1} parent=27 // pred_check
          %p323 = pneg %p112
        $region46: #{tpu_custom_call.1} parent=27 // pred_check_branch
          %325 = sbr.rel (%p323) target = $region48
        $region47: #{tpu_custom_call.1} parent=27 // pred_region
          %s327 = ssub.s32 128, 128
          %328 = vsyncadd %s319, %s327
          %s329 = smul.addr %s26, 128
          %s330 = scalar_lea.hbm %s2, %s329
          %s332 = sshll.u32 %s322, 4
          %s333 = int_to_ptr.vmem [resolvable:$true] %s332
          %335 = dma.vmem_to_hbm [thread:$0]  %s333, 128, %s330, %s319
        $region48: #{tpu_custom_call.1} parent=27 // pred_fallthru
          _
      $region28: #{tpu_custom_call.1} parent=5 // pred_fallthru
        _
      %p336 = scmp.le.s32.totalorder 2, %s17
      // Predicated region
      $region49: #{tpu_custom_call.1} parent=5 // pred_check
        %p337 = pneg %p336
      $region50: #{tpu_custom_call.1} parent=5 // pred_check_branch
        %339 = sbr.rel (%p337) target = $region52
      $region51: #{tpu_custom_call.1} parent=5 // pred_region
        %s340 = ssub.s32 %s17, 2
        // Predicated region
        $region53: #{tpu_custom_call.1} parent=51 // pred_check
          %p341 = pneg %p118
        $region54: #{tpu_custom_call.1} parent=51 // pred_check_branch
          %343 = sbr.rel (%p341) target = $region56
        $region55: #{tpu_custom_call.1} parent=51 // pred_region
          %s344 = sand.u32 %s103, 1
          %s345 = scalar_lea.sflag [#allocation5], %s344
          %s346 = sand.u32 %s103, 1
          %s347 = smul.addr %s346, 8
          %s348 = scalar_lea.vmem [#allocation8], %s347
          %349 = dma.done %s345, 128
        $region56: #{tpu_custom_call.1} parent=51 // pred_fallthru
          _
      $region52: #{tpu_custom_call.1} parent=5 // pred_fallthru
        _
    $region6: #{tpu_custom_call.1} parent=1 // loop_footer
      %s21 = sadd.s32 1, %s17
    $region7: #{tpu_custom_call.1} parent=1 // loop_footer_branch
      %16 = sbr.rel target = $region3
    $region8: #{tpu_custom_call.1} parent=1 // loop_exit
      _
    %350 = vsyncpa [#allocation4], 1
    %s351 = scalar_lea.sflag [#allocation4], 1
    %352 = vsyncpa %s351, 1
    %353 = vsyncpa [#allocation7], 1
    %s354 = scalar_lea.sflag [#allocation7], 1
    %355 = vsyncpa %s354, 1
    %356 = vsyncpa [#allocation5], 1
    %s357 = scalar_lea.sflag [#allocation5], 1
    %358 = vsyncpa %s357, 1

</llo_original>
